<compile_context>
chip_gen: v7x
topology: tpu7x:2x2x1
jax: 0.10.0
libtpu: 0.0.40
codegen_flags: <defaults>
</compile_context>

<pallas_src>
import jax
import jax.numpy as jnp
from jax.experimental import pallas as pl
from jax.experimental.pallas import tpu as pltpu


def _round_up(x, m):
    return ((x + m - 1) // m) * m


def critic_kernel(x_ref, w1_ref, b1_ref, w2_ref, b2_ref, w3_ref, b3_ref, out_ref):
    """Fused 3-layer MLP on one (TB, state_dim) batch tile.

    Layers 1/2: bf16 MXU matmuls with f32 accumulation, f32 bias + ReLU.
    Layer 3 (hidden -> 1): f32 VPU multiply with the [1, hidden] weight row and
    a cross-lane reduction producing a (TB, 1) output block.
    """
    x = x_ref[...].astype(jnp.bfloat16)  # (TB, S)

    h1 = jnp.dot(x, w1_ref[...], preferred_element_type=jnp.float32) + b1_ref[...]
    h1 = jnp.maximum(h1, 0.0)

    h2 = jnp.dot(h1.astype(jnp.bfloat16), w2_ref[...],
                 preferred_element_type=jnp.float32) + b2_ref[...]
    h2 = jnp.maximum(h2, 0.0)

    # out_features == 1 -> avoid a 1-wide MXU result tile; VPU mul + lane reduce.
    v = jnp.sum(h2 * w3_ref[...], axis=-1, keepdims=True) + b3_ref[0]  # (TB, 1)
    out_ref[...] = v.astype(out_ref.dtype)


def critic_forward(state, params, *, batch_tile=4096):
    """Run the critic network on a batch of states.

    Args:
      state:  [B, state_dim] float32
      params: dict with w1 [S,H], b1 [1,H], w2 [H,H], b2 [1,H], w3 [H,1], b3 [1,1]
      batch_tile: max batch rows per grid step (rounded to a multiple of 8,
        clamped to 8192 to respect per-generation scoped-VMEM limits).
    Returns:
      value estimates, shape [B, 1] float32 (matches nn.Linear(hidden, 1)).
    """
    B, S = state.shape
    H = params["w1"].shape[1]

    # Batch tile: only sublane granularity (8) is required since the output
    # block is (TB, 1) and the x block's last dim equals the full state_dim.
    batch_tile = max(8, min(int(batch_tile), 8192))
    batch_tile = _round_up(batch_tile, 8)
    if B > 256:
        # Guarantee >= 2 grid steps so v7x's two TensorCores both get work.
        TB = min(batch_tile, _round_up(-(-B // 2), 128))
    else:
        TB = min(batch_tile, _round_up(B, 8))
    num_tiles = -(-B // TB)  # cdiv; partial final block handled by Pallas masking

    # Weights to bf16 once in the wrapper (tiny, grid-invariant, DMA'd once).
    w1_bf = params["w1"].astype(jnp.bfloat16)
    w2_bf = params["w2"].astype(jnp.bfloat16)
    w3_row = params["w3"].reshape(1, H).astype(jnp.float32)  # [H,1] -> [1,H]
    b3_vec = params["b3"].reshape(1).astype(jnp.float32)     # scalar in SMEM

    flops = 2 * B * (S * H + H * H + H)
    bytes_accessed = (4 * B * S + 4 * B            # x in, value out
                      + 2 * (S * H + H * H)        # bf16 weights
                      + 4 * (2 * H + H + 1))       # biases + w3 row

    out = pl.pallas_call(
        critic_kernel,
        out_shape=jax.ShapeDtypeStruct((B, 1), jnp.float32),
        grid=(num_tiles,),
        in_specs=[
            pl.BlockSpec((TB, S), lambda i: (i, 0)),            # x: streamed per tile
            pl.BlockSpec((S, H), lambda i: (0, 0)),             # w1 (bf16), resident
            pl.BlockSpec((1, H), lambda i: (0, 0)),             # b1 (f32)
            pl.BlockSpec((H, H), lambda i: (0, 0)),             # w2 (bf16), resident
            pl.BlockSpec((1, H), lambda i: (0, 0)),             # b2 (f32)
            pl.BlockSpec((1, H), lambda i: (0, 0)),             # w3 as a row (f32)
            pl.BlockSpec(memory_space=pltpu.MemorySpace.SMEM),  # b3 scalar
        ],
        out_specs=pl.BlockSpec((TB, 1), lambda i: (i, 0)),      # 2-D, no relayout
        compiler_params=pltpu.CompilerParams(
            dimension_semantics=("parallel",),       # shard batch over TCs (v7x)
            vmem_limit_bytes=32 * 1024 * 1024,       # headroom for TB up to 8192
        ),
        cost_estimate=pl.CostEstimate(
            flops=flops, transcendentals=0, bytes_accessed=bytes_accessed),
    )(
        state,
        w1_bf, params["b1"],
        w2_bf, params["b2"],
        w3_row, b3_vec,
    )
    return out


def init_params(key, state_dim, hidden_dim):
    """Deterministic synthetic init (PyTorch-Linear-like uniform fan-in scaling)."""
    ks = jax.random.split(key, 6)

    def lin(kw, kb, fan_in, fan_out):
        bound = 1.0 / jnp.sqrt(fan_in)
        w = jax.random.uniform(kw, (fan_in, fan_out), jnp.float32, -bound, bound)
        b = jax.random.uniform(kb, (1, fan_out), jnp.float32, -bound, bound)
        return w, b

    w1, b1 = lin(ks[0], ks[1], state_dim, hidden_dim)
    w2, b2 = lin(ks[2], ks[3], hidden_dim, hidden_dim)
    w3, b3 = lin(ks[4], ks[5], hidden_dim, 1)
    return {"w1": w1, "b1": b1, "w2": w2, "b2": b2, "w3": w3, "b3": b3}


def _reference(state, params):
    h1 = jnp.maximum(state @ params["w1"] + params["b1"], 0.0)
    h2 = jnp.maximum(h1 @ params["w2"] + params["b2"], 0.0)
    return h2 @ params["w3"] + params["b3"]


if __name__ == "__main__":
    key = jax.random.PRNGKey(0)
    k_param, k_state, k_state2 = jax.random.split(key, 3)

    batch = 8
    state_dim = 16
    hidden_dim = 32

    params = init_params(k_param, state_dim, hidden_dim)
    state = jax.random.normal(k_state, (batch, state_dim), dtype=jnp.float32)

    value = jax.block_until_ready(critic_forward(state, params))
    ref = _reference(state, params)
    assert value.shape == (batch, 1)
    # bf16 MXU operands (f32 accumulation) -> loosened tolerance vs. f32 reference.
    assert jnp.allclose(value, ref, atol=5e-2, rtol=5e-2), float(
        jnp.max(jnp.abs(value - ref)))

    # Exercise the multi-tile path: non-divisible batch (partial final block,
    # no wrapper-side padding) and multiple grid steps.
    batch2 = 300
    state2 = jax.random.normal(k_state2, (batch2, state_dim), dtype=jnp.float32)
    value2 = jax.block_until_ready(critic_forward(state2, params, batch_tile=128))
    ref2 = _reference(state2, params)
    assert value2.shape == (batch2, 1)
    assert jnp.allclose(value2, ref2, atol=5e-2, rtol=5e-2), float(
        jnp.max(jnp.abs(value2 - ref2)))

    print("KERNEL_OK")
</pallas_src>

<mosaic_0001>
module attributes {stable_mosaic.version = 11 : i64} {
  func.func @critic_kernel(%arg0: i32, %arg1: memref<8x16xf32, #tpu.memory_space<vmem>>, %arg2: memref<16x32xbf16, #tpu.memory_space<vmem>>, %arg3: memref<1x32xf32, #tpu.memory_space<vmem>>, %arg4: memref<32x32xbf16, #tpu.memory_space<vmem>>, %arg5: memref<1x32xf32, #tpu.memory_space<vmem>>, %arg6: memref<1x32xf32, #tpu.memory_space<vmem>>, %arg7: memref<1xf32, #tpu.memory_space<smem>>, %arg8: memref<8x1xf32, #tpu.memory_space<vmem>>) attributes {dimension_semantics = [#tpu.dimension_semantics<parallel>], iteration_bounds = array<i64: 1>, scalar_prefetch = 0 : i64, scratch_operands = 0 : i64, tpu.core_type = #tpu.core_type<tc>, window_params = [{transform_indices = @transform_0, window_bounds = array<i64: 8, 16>}, {pipeline_mode = #tpu.pipeline_mode<synchronous>, transform_indices = @transform_1, window_bounds = array<i64: 16, 32>}, {pipeline_mode = #tpu.pipeline_mode<synchronous>, transform_indices = @transform_2, window_bounds = array<i64: 1, 32>}, {pipeline_mode = #tpu.pipeline_mode<synchronous>, transform_indices = @transform_3, window_bounds = array<i64: 32, 32>}, {pipeline_mode = #tpu.pipeline_mode<synchronous>, transform_indices = @transform_4, window_bounds = array<i64: 1, 32>}, {pipeline_mode = #tpu.pipeline_mode<synchronous>, transform_indices = @transform_5, window_bounds = array<i64: 1, 32>}, {transform_indices = @transform_6, window_bounds = array<i64: 1>}, {transform_indices = @transform_7, window_bounds = array<i64: 8, 1>}]} {
    %c0 = arith.constant 0 : index
    %c0_0 = arith.constant 0 : index
    %0 = vector.load %arg1[%c0, %c0_0] : memref<8x16xf32, #tpu.memory_space<vmem>>, vector<8x16xf32>
    %1 = arith.truncf %0 : vector<8x16xf32> to vector<8x16xbf16>
    %c0_1 = arith.constant 0 : index
    %c0_2 = arith.constant 0 : index
    %2 = vector.load %arg2[%c0_1, %c0_2] : memref<16x32xbf16, #tpu.memory_space<vmem>>, vector<16x32xbf16>
    %cst = arith.constant dense<0.000000e+00> : vector<8x32xf32>
    %3 = tpu.matmul %1, %2, %cst {dimension_numbers = #tpu.dot_dimension_numbers<[1], [0], [0], [1], [0, 0, 1, 1], [], []>} : vector<8x16xbf16>, vector<16x32xbf16>, vector<8x32xf32> -> vector<8x32xf32>
    %c0_3 = arith.constant 0 : index
    %c0_4 = arith.constant 0 : index
    %4 = vector.load %arg3[%c0_3, %c0_4] : memref<1x32xf32, #tpu.memory_space<vmem>>, vector<1x32xf32>
    %5 = vector.broadcast %4 : vector<1x32xf32> to vector<8x32xf32>
    %6 = arith.addf %3, %5 : vector<8x32xf32>
    %cst_5 = arith.constant 0.000000e+00 : f32
    %7 = vector.broadcast %cst_5 : f32 to vector<8x32xf32>
    %8 = arith.maximumf %6, %7 : vector<8x32xf32>
    %9 = arith.truncf %8 : vector<8x32xf32> to vector<8x32xbf16>
    %c0_6 = arith.constant 0 : index
    %c0_7 = arith.constant 0 : index
    %10 = vector.load %arg4[%c0_6, %c0_7] : memref<32x32xbf16, #tpu.memory_space<vmem>>, vector<32x32xbf16>
    %cst_8 = arith.constant dense<0.000000e+00> : vector<8x32xf32>
    %11 = tpu.matmul %9, %10, %cst_8 {dimension_numbers = #tpu.dot_dimension_numbers<[1], [0], [0], [1], [0, 0, 1, 1], [], []>} : vector<8x32xbf16>, vector<32x32xbf16>, vector<8x32xf32> -> vector<8x32xf32>
    %c0_9 = arith.constant 0 : index
    %c0_10 = arith.constant 0 : index
    %12 = vector.load %arg5[%c0_9, %c0_10] : memref<1x32xf32, #tpu.memory_space<vmem>>, vector<1x32xf32>
    %13 = vector.broadcast %12 : vector<1x32xf32> to vector<8x32xf32>
    %14 = arith.addf %11, %13 : vector<8x32xf32>
    %cst_11 = arith.constant 0.000000e+00 : f32
    %15 = vector.broadcast %cst_11 : f32 to vector<8x32xf32>
    %16 = arith.maximumf %14, %15 : vector<8x32xf32>
    %c0_12 = arith.constant 0 : index
    %c0_13 = arith.constant 0 : index
    %17 = vector.load %arg6[%c0_12, %c0_13] : memref<1x32xf32, #tpu.memory_space<vmem>>, vector<1x32xf32>
    %18 = vector.broadcast %17 : vector<1x32xf32> to vector<8x32xf32>
    %19 = arith.mulf %16, %18 : vector<8x32xf32>
    %cst_14 = arith.constant dense<0.000000e+00> : vector<8xf32>
    %20 = vector.multi_reduction <add>, %19, %cst_14 [1] : vector<8x32xf32> to vector<8xf32>
    %21 = vector.shape_cast %20 : vector<8xf32> to vector<8x1xf32>
    %c0_15 = arith.constant 0 : index
    %22 = memref.load %arg7[%c0_15] : memref<1xf32, #tpu.memory_space<smem>>
    %23 = vector.broadcast %22 : f32 to vector<8x1xf32>
    %24 = arith.addf %21, %23 : vector<8x1xf32>
    %c0_16 = arith.constant 0 : index
    %c0_17 = arith.constant 0 : index
    %25 = vector.load %arg8[%c0_16, %c0_17] : memref<8x1xf32, #tpu.memory_space<vmem>>, vector<8x1xf32>
    tpu.vector_store %arg8[%c0_16, %c0_17], %24 {strides = array<i32>} : memref<8x1xf32, #tpu.memory_space<vmem>>, vector<8x1xf32>,
    return
  }
  func.func @transform_0(%arg0: i32) -> (i32, i32) {
    %c0_i32 = arith.constant 0 : i32
    %c0_i32_0 = arith.constant 0 : i32
    return %arg0, %c0_i32 : i32, i32
  }
  func.func @transform_1(%arg0: i32) -> (i32, i32) {
    %c0_i32 = arith.constant 0 : i32
    %c0_i32_0 = arith.constant 0 : i32
    %c0_i32_1 = arith.constant 0 : i32
    return %c0_i32, %c0_i32_0 : i32, i32
  }
  func.func @transform_2(%arg0: i32) -> (i32, i32) {
    %c0_i32 = arith.constant 0 : i32
    %c0_i32_0 = arith.constant 0 : i32
    %c0_i32_1 = arith.constant 0 : i32
    return %c0_i32, %c0_i32_0 : i32, i32
  }
  func.func @transform_3(%arg0: i32) -> (i32, i32) {
    %c0_i32 = arith.constant 0 : i32
    %c0_i32_0 = arith.constant 0 : i32
    %c0_i32_1 = arith.constant 0 : i32
    return %c0_i32, %c0_i32_0 : i32, i32
  }
  func.func @transform_4(%arg0: i32) -> (i32, i32) {
    %c0_i32 = arith.constant 0 : i32
    %c0_i32_0 = arith.constant 0 : i32
    %c0_i32_1 = arith.constant 0 : i32
    return %c0_i32, %c0_i32_0 : i32, i32
  }
  func.func @transform_5(%arg0: i32) -> (i32, i32) {
    %c0_i32 = arith.constant 0 : i32
    %c0_i32_0 = arith.constant 0 : i32
    %c0_i32_1 = arith.constant 0 : i32
    return %c0_i32, %c0_i32_0 : i32, i32
  }
  func.func @transform_6(%arg0: i32) -> i32 {
    %c0_i32 = arith.constant 0 : i32
    %c0_i32_0 = arith.constant 0 : i32
    return %c0_i32 : i32
  }
  func.func @transform_7(%arg0: i32) -> (i32, i32) {
    %c0_i32 = arith.constant 0 : i32
    %c0_i32_0 = arith.constant 0 : i32
    return %arg0, %c0_i32 : i32, i32
  }
}

</mosaic_0001>

<llo_original>
// kernel: tpu_custom_call.1
$region0: #{tpu_custom_call.1}
  #allocation0 [shape = 'u32[]', space=smem, size = 0x4, offset = 0x4, fixed_abs, tag = 'smem constant byte address 0x4 - core index']
  #allocation1 [shape = 'u32[144,128]{1,0:T(1,128)}', space=vmem, size = 0x12000, scoped, tag = 'internal scratch']
  #allocation2 [shape = 'f32[1]{0:T(128)S(6)}', space=smem, size = 0x200, scoped, tag = 'scoped memory for tpu_custom_call.1']
  %s0 = inlined_call_operand.hbm [shape: f32[8,16], index: 0, kind: input, shape index: {}]
  %s1 = inlined_call_operand.hbm [shape: bf16[16,32], index: 1, kind: input, shape index: {}]
  %s2 = inlined_call_operand.vmem [shape: f32[1,32], index: 2, kind: input, shape index: {}]
  %s3 = inlined_call_operand.hbm [shape: bf16[32,32], index: 3, kind: input, shape index: {}]
  %s4 = inlined_call_operand.vmem [shape: f32[1,32], index: 4, kind: input, shape index: {}]
  %s5 = inlined_call_operand.vmem [shape: f32[1,32], index: 5, kind: input, shape index: {}]
  %s6 = inlined_call_operand.<no memory space> [shape: f32[1], index: 6, kind: input, shape index: {}]
  %s7 = inlined_call_operand.vmem [shape: f32[8,1], index: 7, kind: output, shape index: {}]
  %s8 = sld [smem:[#allocation0]]
  $region50: #{tpu_custom_call.1} parent=0
    _
  %s10 = ssub.s32 1, %s8
  %s11 = scalar_select 0, %s10, %s8
  %12 = sst [smem:[#allocation2]] %s6
  $region1: #{tpu_custom_call.1} parent=0
    #allocation3 [shape = 'u8[4096]{0}', space=vmem, size = 0x1000, scoped, tag = 'input window, operand 0, single buffered']
    #allocation4 [shape = 's32[1]{0}', space=sflag, size = 0x4, scoped, tag = 'scoped memory for tpu_custom_call.1']
    #allocation5 [shape = 'u8[4096]{0}', space=vmem, size = 0x1000, scoped, tag = 'input window, operand 1, single buffered']
    #allocation6 [shape = 's32[1]{0}', space=sflag, size = 0x4, scoped, tag = 'scoped memory for tpu_custom_call.1']
    #allocation7 [shape = 'u8[8192]{0}', space=vmem, size = 0x2000, scoped, tag = 'input window, operand 3, single buffered']
    %13 = vsyncpa [#allocation4], 0
    %14 = vsyncpa [#allocation6], 0
    // Predicated region
    $region2: #{tpu_custom_call.1} parent=1 // pred_check
      _
    $region3: #{tpu_custom_call.1} parent=1 // pred_check_branch
      %16 = sbr.rel (0) target = $region5
    $region4: #{tpu_custom_call.1} parent=1 // pred_region
      %s18 = ssub.s32 128, 128
      %19 = vsyncadd [#allocation4], %s18
      %s21 = sshll.u32 [#allocation3], 4
      %s22 = int_to_ptr.vmem [resolvable:$true] %s21
      %24 = dma.hbm_to_vmem [thread:$0]  %s0, 128, %s22, [#allocation4]
    $region5: #{tpu_custom_call.1} parent=1 // pred_fallthru
      _
    // Predicated region
    $region6: #{tpu_custom_call.1} parent=1 // pred_check
      _
    $region7: #{tpu_custom_call.1} parent=1 // pred_check_branch
      %26 = sbr.rel (0) target = $region9
    $region8: #{tpu_custom_call.1} parent=1 // pred_region
      %s28 = ssub.s32 128, 128
      %29 = vsyncadd [#allocation6], %s28
      %s30 = sshll.u32 [#allocation5], 4
      %s31 = int_to_ptr.vmem [resolvable:$true] %s30
      %36 = dma.hbm_to_vmem [thread:$0]  %s1, 128, %s31, [#allocation6], 64, 64, 4
    $region9: #{tpu_custom_call.1} parent=1 // pred_fallthru
      _
    // Predicated region
    $region10: #{tpu_custom_call.1} parent=1 // pred_check
      _
    $region11: #{tpu_custom_call.1} parent=1 // pred_check_branch
      %38 = sbr.rel (0) target = $region13
    $region12: #{tpu_custom_call.1} parent=1 // pred_region
      _
    $region13: #{tpu_custom_call.1} parent=1 // pred_fallthru
      _
    // Predicated region
    $region14: #{tpu_custom_call.1} parent=1 // pred_check
      _
    $region15: #{tpu_custom_call.1} parent=1 // pred_check_branch
      %40 = sbr.rel (0) target = $region17
    $region16: #{tpu_custom_call.1} parent=1 // pred_region
      %s42 = ssub.s32 256, 256
      %43 = vsyncadd [#allocation6], %s42
      %s44 = sshll.u32 [#allocation7], 4
      %s45 = int_to_ptr.vmem [resolvable:$true] %s44
      %50 = dma.hbm_to_vmem [thread:$0]  %s3, 256, %s45, [#allocation6], 64, 64, 4
    $region17: #{tpu_custom_call.1} parent=1 // pred_fallthru
      _
    // Predicated region
    $region18: #{tpu_custom_call.1} parent=1 // pred_check
      _
    $region19: #{tpu_custom_call.1} parent=1 // pred_check_branch
      %52 = sbr.rel (0) target = $region21
    $region20: #{tpu_custom_call.1} parent=1 // pred_region
      _
    $region21: #{tpu_custom_call.1} parent=1 // pred_fallthru
      _
    // Predicated region
    $region22: #{tpu_custom_call.1} parent=1 // pred_check
      _
    $region23: #{tpu_custom_call.1} parent=1 // pred_check_branch
      %54 = sbr.rel (0) target = $region25
    $region24: #{tpu_custom_call.1} parent=1 // pred_region
      _
    $region25: #{tpu_custom_call.1} parent=1 // pred_fallthru
      _
    // Predicated region
    $region26: #{tpu_custom_call.1} parent=1 // pred_check
      _
    $region27: #{tpu_custom_call.1} parent=1 // pred_check_branch
      %56 = sbr.rel (0) target = $region29
    $region28: #{tpu_custom_call.1} parent=1 // pred_region
      _
    $region29: #{tpu_custom_call.1} parent=1 // pred_fallthru
      _
    // Predicated region
    $region30: #{tpu_custom_call.1} parent=1 // pred_check
      _
    $region31: #{tpu_custom_call.1} parent=1 // pred_check_branch
      %58 = sbr.rel (0) target = $region33
    $region32: #{tpu_custom_call.1} parent=1 // pred_region
      %59 = dma.done [#allocation4], 128
    $region33: #{tpu_custom_call.1} parent=1 // pred_fallthru
      _
    // Predicated region
    $region34: #{tpu_custom_call.1} parent=1 // pred_check
      _
    $region35: #{tpu_custom_call.1} parent=1 // pred_check_branch
      %61 = sbr.rel (0) target = $region37
    $region36: #{tpu_custom_call.1} parent=1 // pred_region
      %62 = dma.done [#allocation6], 128
    $region37: #{tpu_custom_call.1} parent=1 // pred_fallthru
      _
    // Predicated region
    $region38: #{tpu_custom_call.1} parent=1 // pred_check
      _
    $region39: #{tpu_custom_call.1} parent=1 // pred_check_branch
      %64 = sbr.rel (0) target = $region41
    $region40: #{tpu_custom_call.1} parent=1 // pred_region
      %65 = dma.done [#allocation6], 256
    $region41: #{tpu_custom_call.1} parent=1 // pred_fallthru
      _
    %v67 = vld [vmem:[#allocation3] sm:$0xff]
    %v68 = vpack.c.bf16 %v67, %v67
    %v69 = vld [vmem:[#allocation5] sm:$0xf]
    %v70 = vld [vmem:[#allocation5 + $0x4] sm:$0xf]
    %v71 = vld [vmem:[%s2] sm:$0x1]
    %v73 = vlaneseq
    %v74 = vshrl.u32 %v73, 7
    %v75 = vsub.s32 0, %v74
    %v76 = vrot.slane %v71, %v75
    %v80 = vunpack.c.l.b16 %v69
    %v81 = vunpack.c.l.b16 %v70
    %v82 = vpack.c.b16 %v81, %v80
    %vm84 = vcmask 130048
    %v86 = vsel %vm84, %v68, 0
    %88 = vmatprep.subr.bf16.mxu0 0
    %89 = vmatpush1.bf16.msra.mxu0 %v82
    %90 = vmatprep.subr.bf16.mxu0 0
    %91 = vmatpush1.bf16.msra.mxu0 0
    %92 = vmatprep.subr.bf16.mxu0 0
    %93 = vmatpush1.bf16.msra.mxu0 0
    %94 = vmatprep.subr.bf16.mxu0 0
    %95 = vmatpush1.bf16.msra.mxu0 0
    %96 = vmatprep.subr.bf16.mxu0 0
    %97 = vmatpush1.bf16.msra.mxu0 0
    %98 = vmatprep.subr.bf16.mxu0 0
    %99 = vmatpush1.bf16.msra.mxu0 0
    %100 = vmatprep.subr.bf16.mxu0 0
    %101 = vmatpush1.bf16.msra.mxu0 0
    %102 = vmatprep.subr.bf16.mxu0 0
    %103 = vmatpush1.bf16.msra.mxu0 0
    %104 = vmatprep.subr.bf16.mxu0 0
    %105 = vmatpush1.bf16.msra.mxu0 0
    %106 = vmatprep.subr.bf16.mxu0 0
    %107 = vmatpush1.bf16.msra.mxu0 0
    %108 = vmatprep.subr.bf16.mxu0 0
    %109 = vmatpush1.bf16.msra.mxu0 0
    %110 = vmatprep.subr.bf16.mxu0 0
    %111 = vmatpush1.bf16.msra.mxu0 0
    %112 = vmatprep.subr.bf16.mxu0 0
    %113 = vmatpush1.bf16.msra.mxu0 0
    %114 = vmatprep.subr.bf16.mxu0 0
    %115 = vmatpush1.bf16.msra.mxu0 0
    %116 = vmatprep.subr.bf16.mxu0 0
    %117 = vmatpush1.bf16.msra.mxu0 0
    %118 = vmatprep.subr.bf16.mxu0 0
    %119 = vmatpush1.bf16.msra.mxu0 0
    %120 = vmatprep.mubr.bf16.mxu0 0
    %121 = vmatmul.mubr.bf16.gmra.mrb[0].mxu0 %v86
    %v122 = vpop.f32.mrb[0].mxu0
    %v123 = vadd.f32 %v76, %v122
    %v124 = vpop.f32.mrb[0].mxu0
    %v125 = vpop.f32.mrb[0].mxu0
    %v126 = vpop.f32.mrb[0].mxu0
    %127 = vdwg.mxu0
    %v128 = vmax.f32 %v123, 0.0
    %v129 = vpack.c.bf16 %v128, %v128
    %v130 = vld [vmem:[#allocation7] sm:$0xf]
    %v131 = vld [vmem:[#allocation7 + $0x4] sm:$0xf]
    %v132 = vld [vmem:[#allocation7 + $0x8] sm:$0xf]
    %v133 = vld [vmem:[#allocation7 + $0xc] sm:$0xf]
    %v134 = vld [vmem:[%s4] sm:$0x1]
    %v136 = vlaneseq
    %v137 = vshrl.u32 %v136, 7
    %v138 = vsub.s32 0, %v137
    %v139 = vrot.slane %v134, %v138
    %v145 = vunpack.c.l.b16 %v130
    %v146 = vunpack.c.l.b16 %v131
    %v147 = vunpack.c.l.b16 %v132
    %v148 = vunpack.c.l.b16 %v133
    %v149 = vpack.c.b16 %v146, %v145
    %v150 = vpack.c.b16 %v148, %v147
    %vm153 = vcmask 261120
    %v155 = vsel %vm153, %v129, 0
    %157 = vmatprep.subr.bf16.mxu0 0
    %158 = vmatpush1.bf16.msra.mxu0 %v149
    %159 = vmatprep.subr.bf16.mxu0 0
    %160 = vmatpush1.bf16.msra.mxu0 %v150
    %161 = vmatprep.subr.bf16.mxu0 0
    %162 = vmatpush1.bf16.msra.mxu0 0
    %163 = vmatprep.subr.bf16.mxu0 0
    %164 = vmatpush1.bf16.msra.mxu0 0
    %165 = vmatprep.subr.bf16.mxu0 0
    %166 = vmatpush1.bf16.msra.mxu0 0
    %167 = vmatprep.subr.bf16.mxu0 0
    %168 = vmatpush1.bf16.msra.mxu0 0
    %169 = vmatprep.subr.bf16.mxu0 0
    %170 = vmatpush1.bf16.msra.mxu0 0
    %171 = vmatprep.subr.bf16.mxu0 0
    %172 = vmatpush1.bf16.msra.mxu0 0
    %173 = vmatprep.subr.bf16.mxu0 0
    %174 = vmatpush1.bf16.msra.mxu0 0
    %175 = vmatprep.subr.bf16.mxu0 0
    %176 = vmatpush1.bf16.msra.mxu0 0
    %177 = vmatprep.subr.bf16.mxu0 0
    %178 = vmatpush1.bf16.msra.mxu0 0
    %179 = vmatprep.subr.bf16.mxu0 0
    %180 = vmatpush1.bf16.msra.mxu0 0
    %181 = vmatprep.subr.bf16.mxu0 0
    %182 = vmatpush1.bf16.msra.mxu0 0
    %183 = vmatprep.subr.bf16.mxu0 0
    %184 = vmatpush1.bf16.msra.mxu0 0
    %185 = vmatprep.subr.bf16.mxu0 0
    %186 = vmatpush1.bf16.msra.mxu0 0
    %187 = vmatprep.subr.bf16.mxu0 0
    %188 = vmatpush1.bf16.msra.mxu0 0
    %189 = vmatprep.mubr.bf16.mxu0 0
    %190 = vmatmul.mubr.bf16.gmra.mrb[0].mxu0 %v155
    %v191 = vpop.f32.mrb[0].mxu0
    %v192 = vadd.f32 %v139, %v191
    %v193 = vpop.f32.mrb[0].mxu0
    %v194 = vpop.f32.mrb[0].mxu0
    %v195 = vpop.f32.mrb[0].mxu0
    %196 = vdwg.mxu0
    %v197 = vmax.f32 %v192, 0.0
    %v198 = vld [vmem:[%s5] sm:$0x1]
    %v200 = vlaneseq
    %v201 = vshrl.u32 %v200, 7
    %v202 = vsub.s32 0, %v201
    %v203 = vrot.slane %v198, %v202
    %v205 = vmul.f32 %v197, %v203
    %v206 = vsel %vm153, %v205, 0.0
    %207 = vadd.xlane.f32.xlu0 %v206
    %v208 = vpop.xlane.xlu0 %207
    %s209 = sld [smem:[#allocation2]]
    %v210 = vstv %s209
    %v211 = vadd.f32 %v208, %v210
    %vm212 = vcmask 7168
    %213 = vst.msk [vmem:[%s7] sm:$0xff] %vm212, %v211
    // Predicated region
    $region42: #{tpu_custom_call.1} parent=1 // pred_check
      _
    $region43: #{tpu_custom_call.1} parent=1 // pred_check_branch
      %215 = sbr.rel (0) target = $region45
    $region44: #{tpu_custom_call.1} parent=1 // pred_region
      _
    $region45: #{tpu_custom_call.1} parent=1 // pred_fallthru
      _
    // Predicated region
    $region46: #{tpu_custom_call.1} parent=1 // pred_check
      _
    $region47: #{tpu_custom_call.1} parent=1 // pred_check_branch
      %217 = sbr.rel (0) target = $region49
    $region48: #{tpu_custom_call.1} parent=1 // pred_region
      _
    $region49: #{tpu_custom_call.1} parent=1 // pred_fallthru
      _
    %218 = vsyncpa [#allocation4], 1
    %219 = vsyncpa [#allocation6], 1

</llo_original>
